<compile_context>
chip_gen: v6e
topology: v6e:2x2x1
jax: 0.10.0
libtpu: 0.0.40
codegen_flags: <defaults>
</compile_context>

<pallas_src>
import functools
import math

import jax
import jax.numpy as jnp
from jax.experimental import pallas as pl
from jax.experimental.pallas import tpu as pltpu

# ----- deterministic hyper-parameters of the printed layer -----
GMIN = 0.01
GMAX = 10.0

# eta for ACT (pTanh circuit) and INV (inverter circuit): f(x)=e0+e1*tanh((x-e2)*e3)
ETA_ACT = (0.0, 1.0, 0.25, 5.0)   # eta_act[2] in (0,1)
ETA_INV = (1.0, -1.0, 0.5, 4.0)

VMEM_BUDGET = 24 * 1024 * 1024          # target double-buffered working set
VMEM_LIMIT = 32 * 1024 * 1024           # scoped VMEM limit (fits v5e/v6e/v7x)


def _circuit(x, eta):
    e0, e1, e2, e3 = eta
    return e0 + e1 * jnp.tanh((x - e2) * e3)


def _round_up(x, m):
    return (x + m - 1) // m * m


# ---------------------------------------------------------------------------
# Kernels
# ---------------------------------------------------------------------------
def player_kernel_single_n(a_ref, wp_ref, wn_ref, b_ref, out_ref, *, mxu_dtype):
    """Single output-column tile: no scratch, INV(a) stays in vregs.

    a_ref  : [B_TILE, K_pad]  f32 activations
    wp_ref : [K_pad, N_TILE]  mxu_dtype positive weights
    wn_ref : [K_pad, N_TILE]  mxu_dtype negative weights
    b_ref  : [1, N_TILE]      f32 folded bias row
    out_ref: [B_TILE, N_TILE] f32
    """
    a = a_ref[...]                                      # f32
    inv_a = _circuit(a, ETA_INV).astype(mxu_dtype)      # inverter circuit (EUP, f32 math)
    z = (jnp.dot(a.astype(mxu_dtype), wp_ref[...], preferred_element_type=jnp.float32)
         + jnp.dot(inv_a, wn_ref[...], preferred_element_type=jnp.float32)
         + b_ref[...])
    out_ref[...] = _circuit(z, ETA_ACT)                 # activation circuit (f32)


def player_kernel_tiled_n(a_ref, wp_ref, wn_ref, b_ref, out_ref, inv_ref, *, mxu_dtype):
    """Multiple output-column tiles: INV(a) computed once per batch tile.

    inv_ref : [B_TILE, K_pad] mxu_dtype scratch, persists across the n axis.
    """
    @pl.when(pl.program_id(1) == 0)
    def _():
        inv_ref[...] = _circuit(a_ref[...], ETA_INV).astype(mxu_dtype)

    z = (jnp.dot(a_ref[...].astype(mxu_dtype), wp_ref[...],
                 preferred_element_type=jnp.float32)
         + jnp.dot(inv_ref[...], wn_ref[...], preferred_element_type=jnp.float32)
         + b_ref[...])
    out_ref[...] = _circuit(z, ETA_ACT)


# ---------------------------------------------------------------------------
# Wrapper
# ---------------------------------------------------------------------------
def player_forward(a, theta, *, mxu_dtype=jnp.bfloat16):
    """a: [B, n_in] f32, theta: [n_in+2, n_out] f32 -> [B, n_out] f32."""
    B, n_in = a.shape
    assert theta.shape[0] == n_in + 2
    n_out = theta.shape[1]

    # ---- weight conditioning: hoisted out of the kernel, done once per call ----
    th = jnp.clip(theta, -GMAX, GMAX)
    th = jnp.where(jnp.abs(th) < GMIN, 0.0, th)
    abs_t = jnp.abs(th)
    # NaN if an entire theta column falls below gmin (0/0) -- matches the
    # PyTorch reference; it would propagate into every output of that column.
    W = abs_t / jnp.sum(abs_t, axis=0, keepdims=True)
    pos = (th >= 0.0).astype(jnp.float32)
    Wp = W * pos
    Wn = W * (1.0 - pos)

    # Fold the [ones, zeros] extension columns algebraically:
    #   z = a @ Wp[:n_in] + INV(a) @ Wn[:n_in] + Wp[n_in] + INV(1)*Wn[n_in]
    # (row n_in+1 drops out: a_ext[:, -1] == 0 and a_neg[:, -1] is forced to 0).
    inv_one = ETA_INV[0] + ETA_INV[1] * math.tanh((1.0 - ETA_INV[2]) * ETA_INV[3])
    bias = (Wp[n_in] + inv_one * Wn[n_in])[None, :]          # [1, n_out], stays f32
    wp = Wp[:n_in]                                           # [n_in, n_out]
    wn = Wn[:n_in]

    # ---- padding / tiling ----
    K_pad = _round_up(max(n_in, 1), 8)                       # aligned K feed & scratch

    if n_out <= 512:
        N_TILE = _round_up(n_out, 128)                       # single lane-dense N tile
    else:
        N_TILE = min((512, 256, 128), key=lambda t: (_round_up(n_out, t), -t))

    if B <= 128:
        B_TILE = _round_up(B, 8)
    else:
        B_TILE = min((512, 256, 128), key=lambda t: (_round_up(B, t), -t))

    mxu_bytes = jnp.dtype(mxu_dtype).itemsize

    def working_set(bt, nt):
        return (2 * bt * K_pad * 4                 # a tile (f32), double buffered
                + 2 * 2 * K_pad * nt * mxu_bytes   # wp + wn tiles, double buffered
                + 2 * nt * 4                       # bias row, double buffered
                + 2 * bt * nt * 4                  # out tile (f32), double buffered
                + bt * K_pad * mxu_bytes)          # INV scratch

    while working_set(B_TILE, N_TILE) > VMEM_BUDGET and B_TILE > 128:
        B_TILE //= 2
    while working_set(B_TILE, N_TILE) > VMEM_BUDGET and N_TILE > 128:
        N_TILE = max(128, (N_TILE // 2) // 128 * 128)

    # v7x has 2 TensorCores: avoid a 1x1 grid when the batch tile can be split.
    if (_round_up(B, B_TILE) // B_TILE == 1
            and _round_up(n_out, N_TILE) // N_TILE == 1
            and B_TILE >= 256):
        B_TILE //= 2

    B_pad = _round_up(B, B_TILE)
    N_pad = _round_up(n_out, N_TILE)

    a_in = a if B_pad == B else jnp.pad(a, ((0, B_pad - B), (0, 0)))
    if K_pad != n_in:
        a_in = jnp.pad(a_in, ((0, 0), (0, K_pad - n_in)))
        wp = jnp.pad(wp, ((0, K_pad - n_in), (0, 0)))
        wn = jnp.pad(wn, ((0, K_pad - n_in), (0, 0)))
    if N_pad != n_out:
        wp = jnp.pad(wp, ((0, 0), (0, N_pad - n_out)))
        wn = jnp.pad(wn, ((0, 0), (0, N_pad - n_out)))
        bias = jnp.pad(bias, ((0, 0), (0, N_pad - n_out)))

    # Pre-cast the weights to the MXU dtype in the wrapper (halves W HBM bytes
    # and VMEM footprint for bf16); bias and all elementwise math stay f32.
    wp = wp.astype(mxu_dtype)
    wn = wn.astype(mxu_dtype)

    grid = (B_pad // B_TILE, N_pad // N_TILE)
    multi_n = grid[1] > 1
    if multi_n:
        kernel = functools.partial(player_kernel_tiled_n, mxu_dtype=mxu_dtype)
        scratch = [pltpu.VMEM((B_TILE, K_pad), mxu_dtype)]
    else:
        kernel = functools.partial(player_kernel_single_n, mxu_dtype=mxu_dtype)
        scratch = []

    out = pl.pallas_call(
        kernel,
        out_shape=jax.ShapeDtypeStruct((B_pad, N_pad), jnp.float32),
        grid_spec=pltpu.PrefetchScalarGridSpec(
            num_scalar_prefetch=0,
            grid=grid,
            in_specs=[
                pl.BlockSpec((B_TILE, K_pad), lambda b, n: (b, 0)),     # a
                pl.BlockSpec((K_pad, N_TILE), lambda b, n: (0, n)),     # Wp (top rows)
                pl.BlockSpec((K_pad, N_TILE), lambda b, n: (0, n)),     # Wn (top rows)
                pl.BlockSpec((1, N_TILE), lambda b, n: (0, n)),         # folded bias
            ],
            out_specs=pl.BlockSpec((B_TILE, N_TILE), lambda b, n: (b, n)),
            scratch_shapes=scratch,
        ),
        compiler_params=pltpu.CompilerParams(
            # batch axis parallel (megacore), N axis arbitrary so the INV-scratch
            # pl.when(j == 0) guard is always seen by the core owning a batch tile.
            dimension_semantics=("parallel", "arbitrary"),
            vmem_limit_bytes=VMEM_LIMIT),
    )(a_in, wp, wn, bias)

    return out[:B, :n_out]


# ---------------------------------------------------------------------------
# Reference + init
# ---------------------------------------------------------------------------
def init_theta(key, n_in, n_out):
    """Deterministic replica of pLayer.__init__ parameter construction."""
    theta = jax.random.uniform(key, (n_in + 2, n_out), dtype=jnp.float32) / 100.0 + GMIN
    theta = theta.at[-1, :].add(GMAX)
    eta2 = float(ETA_ACT[2])
    theta = theta.at[-2, :].set(
        eta2 / (1.0 - eta2) * (jnp.sum(theta[:-2, :], axis=0) + theta[-1, :]))
    return theta


def player_reference(a, theta):
    """Pure-JAX reference following the original (un-folded) formulation."""
    th = jnp.clip(theta, -GMAX, GMAX)
    th = jnp.where(jnp.abs(th) < GMIN, 0.0, th)
    W = jnp.abs(th) / jnp.sum(jnp.abs(th), axis=0, keepdims=True)
    pos = (th >= 0.0).astype(jnp.float32)
    neg = 1.0 - pos
    B = a.shape[0]
    a_ext = jnp.concatenate(
        [a, jnp.ones((B, 1), a.dtype), jnp.zeros((B, 1), a.dtype)], axis=1)
    a_neg = _circuit(a_ext, ETA_INV)
    a_neg = a_neg.at[:, -1].set(0.0)
    z = a_ext @ (W * pos) + a_neg @ (W * neg)
    return _circuit(z, ETA_ACT)


if __name__ == "__main__":
    # TODO(synk): ACT/INV learnable etas and the straight-through theta trick only
    # affect training/backward; forward uses the fixed tanh circuits modeled above.
    key = jax.random.PRNGKey(0)
    k_a, k_theta, k_a2, k_theta2 = jax.random.split(key, 4)

    # --- small printed layer (single N-tile, no-scratch kernel path) ---
    batch, n_in, n_out = 2, 4, 8
    a = jax.random.uniform(k_a, (batch, n_in), dtype=jnp.float32)
    theta = init_theta(k_theta, n_in, n_out)
    ref = player_reference(a, theta)

    out_f32 = jax.block_until_ready(player_forward(a, theta, mxu_dtype=jnp.float32))
    assert out_f32.shape == (batch, n_out)
    assert jnp.allclose(out_f32, ref, atol=1e-4, rtol=1e-4), "f32 kernel mismatch vs reference"

    out_bf16 = jax.block_until_ready(player_forward(a, theta))   # default: bf16 at the MXU
    assert jnp.allclose(out_bf16, ref, atol=5e-2, rtol=0.0), "bf16 kernel mismatch vs reference"

    # --- wider layer exercising the tiled-N (pl.when-guarded scratch) path ---
    batch2, n_in2, n_out2 = 16, 8, 640
    a2 = jax.random.uniform(k_a2, (batch2, n_in2), dtype=jnp.float32)
    theta2 = init_theta(k_theta2, n_in2, n_out2)
    ref2 = player_reference(a2, theta2)

    out2_f32 = jax.block_until_ready(player_forward(a2, theta2, mxu_dtype=jnp.float32))
    assert out2_f32.shape == (batch2, n_out2)
    assert jnp.allclose(out2_f32, ref2, atol=1e-4, rtol=1e-4), "tiled-N f32 kernel mismatch"

    out2_bf16 = jax.block_until_ready(player_forward(a2, theta2))
    assert jnp.allclose(out2_bf16, ref2, atol=5e-2, rtol=0.0), "tiled-N bf16 kernel mismatch"

    print("KERNEL_OK")
</pallas_src>

<mosaic_0001>
module attributes {stable_mosaic.version = 11 : i64} {
  func.func @player_kernel_single_n(%arg0: i32, %arg1: i32, %arg2: memref<8x8xf32, #tpu.memory_space<vmem>>, %arg3: memref<8x128xf32, #tpu.memory_space<vmem>>, %arg4: memref<8x128xf32, #tpu.memory_space<vmem>>, %arg5: memref<1x128xf32, #tpu.memory_space<vmem>>, %arg6: memref<8x128xf32, #tpu.memory_space<vmem>>) attributes {dimension_semantics = [#tpu.dimension_semantics<parallel>, #tpu.dimension_semantics<arbitrary>], iteration_bounds = array<i64: 1, 1>, scalar_prefetch = 0 : i64, scratch_operands = 0 : i64, tpu.core_type = #tpu.core_type<tc>, window_params = [{transform_indices = @transform_0, window_bounds = array<i64: 8, 8>}, {transform_indices = @transform_1, window_bounds = array<i64: 8, 128>}, {transform_indices = @transform_2, window_bounds = array<i64: 8, 128>}, {transform_indices = @transform_3, window_bounds = array<i64: 1, 128>}, {transform_indices = @transform_4, window_bounds = array<i64: 8, 128>}]} {
    %c0 = arith.constant 0 : index
    %c0_0 = arith.constant 0 : index
    %0 = vector.load %arg2[%c0, %c0_0] : memref<8x8xf32, #tpu.memory_space<vmem>>, vector<8x8xf32>
    %cst = arith.constant 5.000000e-01 : f32
    %1 = vector.broadcast %cst : f32 to vector<8x8xf32>
    %2 = arith.subf %0, %1 : vector<8x8xf32>
    %cst_1 = arith.constant 4.000000e+00 : f32
    %3 = vector.broadcast %cst_1 : f32 to vector<8x8xf32>
    %4 = arith.mulf %2, %3 : vector<8x8xf32>
    %5 = math.tanh %4 : vector<8x8xf32>
    %cst_2 = arith.constant -1.000000e+00 : f32
    %6 = vector.broadcast %cst_2 : f32 to vector<8x8xf32>
    %7 = arith.mulf %6, %5 : vector<8x8xf32>
    %cst_3 = arith.constant 1.000000e+00 : f32
    %8 = vector.broadcast %cst_3 : f32 to vector<8x8xf32>
    %9 = arith.addf %8, %7 : vector<8x8xf32>
    %c0_4 = arith.constant 0 : index
    %c0_5 = arith.constant 0 : index
    %10 = vector.load %arg3[%c0_4, %c0_5] : memref<8x128xf32, #tpu.memory_space<vmem>>, vector<8x128xf32>
    %cst_6 = arith.constant dense<0.000000e+00> : vector<8x128xf32>
    %11 = tpu.matmul %0, %10, %cst_6 {dimension_numbers = #tpu.dot_dimension_numbers<[1], [0], [0], [1], [0, 0, 1, 1], [], []>} : vector<8x8xf32>, vector<8x128xf32>, vector<8x128xf32> -> vector<8x128xf32>
    %c0_7 = arith.constant 0 : index
    %c0_8 = arith.constant 0 : index
    %12 = vector.load %arg4[%c0_7, %c0_8] : memref<8x128xf32, #tpu.memory_space<vmem>>, vector<8x128xf32>
    %cst_9 = arith.constant dense<0.000000e+00> : vector<8x128xf32>
    %13 = tpu.matmul %9, %12, %cst_9 {dimension_numbers = #tpu.dot_dimension_numbers<[1], [0], [0], [1], [0, 0, 1, 1], [], []>} : vector<8x8xf32>, vector<8x128xf32>, vector<8x128xf32> -> vector<8x128xf32>
    %14 = arith.addf %11, %13 : vector<8x128xf32>
    %c0_10 = arith.constant 0 : index
    %c0_11 = arith.constant 0 : index
    %15 = vector.load %arg5[%c0_10, %c0_11] : memref<1x128xf32, #tpu.memory_space<vmem>>, vector<1x128xf32>
    %16 = vector.broadcast %15 : vector<1x128xf32> to vector<8x128xf32>
    %17 = arith.addf %14, %16 : vector<8x128xf32>
    %cst_12 = arith.constant 2.500000e-01 : f32
    %18 = vector.broadcast %cst_12 : f32 to vector<8x128xf32>
    %19 = arith.subf %17, %18 : vector<8x128xf32>
    %cst_13 = arith.constant 5.000000e+00 : f32
    %20 = vector.broadcast %cst_13 : f32 to vector<8x128xf32>
    %21 = arith.mulf %19, %20 : vector<8x128xf32>
    %22 = math.tanh %21 : vector<8x128xf32>
    %cst_14 = arith.constant 1.000000e+00 : f32
    %23 = vector.broadcast %cst_14 : f32 to vector<8x128xf32>
    %24 = arith.mulf %23, %22 : vector<8x128xf32>
    %cst_15 = arith.constant 0.000000e+00 : f32
    %25 = vector.broadcast %cst_15 : f32 to vector<8x128xf32>
    %26 = arith.addf %25, %24 : vector<8x128xf32>
    %c0_16 = arith.constant 0 : index
    %c0_17 = arith.constant 0 : index
    %27 = vector.load %arg6[%c0_16, %c0_17] : memref<8x128xf32, #tpu.memory_space<vmem>>, vector<8x128xf32>
    tpu.vector_store %arg6[%c0_16, %c0_17], %26 {strides = array<i32>} : memref<8x128xf32, #tpu.memory_space<vmem>>, vector<8x128xf32>,
    return
  }
  func.func @transform_0(%arg0: i32, %arg1: i32) -> (i32, i32) {
    %c0_i32 = arith.constant 0 : i32
    %c0_i32_0 = arith.constant 0 : i32
    return %arg0, %c0_i32 : i32, i32
  }
  func.func @transform_1(%arg0: i32, %arg1: i32) -> (i32, i32) {
    %c0_i32 = arith.constant 0 : i32
    %c0_i32_0 = arith.constant 0 : i32
    return %c0_i32, %arg1 : i32, i32
  }
  func.func @transform_2(%arg0: i32, %arg1: i32) -> (i32, i32) {
    %c0_i32 = arith.constant 0 : i32
    %c0_i32_0 = arith.constant 0 : i32
    return %c0_i32, %arg1 : i32, i32
  }
  func.func @transform_3(%arg0: i32, %arg1: i32) -> (i32, i32) {
    %c0_i32 = arith.constant 0 : i32
    %c0_i32_0 = arith.constant 0 : i32
    return %c0_i32, %arg1 : i32, i32
  }
  func.func @transform_4(%arg0: i32, %arg1: i32) -> (i32, i32) {
    %c0_i32 = arith.constant 0 : i32
    return %arg0, %arg1 : i32, i32
  }
}

</mosaic_0001>

<llo_original>
// kernel: tpu_custom_call.1
$region0: #{tpu_custom_call.1}
  #allocation0 [shape = 'u32[]', space=smem, size = 0x4, offset = 0x4, fixed_abs, tag = 'smem constant byte address 0x4 - core index']
  #allocation1 [shape = 'u32[144,128]{1,0:T(1,128)}', space=vmem, size = 0x12000, scoped, tag = 'internal scratch']
  %s0 = inlined_call_operand.hbm [shape: f32[8,8], index: 0, kind: input, shape index: {}]
  %s1 = inlined_call_operand.hbm [shape: f32[8,128], index: 1, kind: input, shape index: {}]
  %s2 = inlined_call_operand.hbm [shape: f32[8,128], index: 2, kind: input, shape index: {}]
  %s3 = inlined_call_operand.vmem [shape: f32[1,128], index: 3, kind: input, shape index: {}]
  %s4 = inlined_call_operand.hbm [shape: f32[8,128], index: 4, kind: output, shape index: {}]
  %s5 = sld [smem:[#allocation0]]
  $region38: #{tpu_custom_call.1} parent=0
    _
  %s7 = ssub.s32 1, %s5
  %s8 = scalar_select 0, %s7, %s5
  $region1: #{tpu_custom_call.1} parent=0
    #allocation2 [shape = 'u8[4096]{0}', space=vmem, size = 0x1000, scoped, tag = 'input window, operand 0, single buffered']
    #allocation3 [shape = 's32[1]{0}', space=sflag, size = 0x4, scoped, tag = 'scoped memory for tpu_custom_call.1']
    #allocation4 [shape = 's32[1]{0}', space=sflag, size = 0x4, scoped, tag = 'scoped memory for tpu_custom_call.1']
    #allocation5 [shape = 'u8[4096]{0}', space=vmem, size = 0x1000, scoped, tag = 'input window, operand 1, single buffered']
    #allocation6 [shape = 's32[1]{0}', space=sflag, size = 0x4, scoped, tag = 'scoped memory for tpu_custom_call.1']
    #allocation7 [shape = 'u8[4096]{0}', space=vmem, size = 0x1000, scoped, tag = 'input window, operand 2, single buffered']
    #allocation8 [shape = 'u8[4096]{0}', space=vmem, size = 0x1000, scoped, tag = 'output window, operand 0, single buffered']
    %9 = vsyncpa [#allocation3], 0
    %10 = vsyncpa [#allocation6], 0
    %11 = vsyncpa [#allocation4], 0
    // Predicated region
    $region2: #{tpu_custom_call.1} parent=1 // pred_check
      _
    $region3: #{tpu_custom_call.1} parent=1 // pred_check_branch
      %13 = sbr.rel (0) target = $region5
    $region4: #{tpu_custom_call.1} parent=1 // pred_region
      %s15 = ssub.s32 128, 128
      %16 = vsyncadd [#allocation3], %s15
      %s18 = sshll.u32 [#allocation2], 4
      %s19 = int_to_ptr.vmem [resolvable:$true] %s18
      %21 = dma.hbm_to_vmem [thread:$0]  %s0, 128, %s19, [#allocation3]
    $region5: #{tpu_custom_call.1} parent=1 // pred_fallthru
      _
    // Predicated region
    $region6: #{tpu_custom_call.1} parent=1 // pred_check
      _
    $region7: #{tpu_custom_call.1} parent=1 // pred_check_branch
      %23 = sbr.rel (0) target = $region9
    $region8: #{tpu_custom_call.1} parent=1 // pred_region
      %s25 = ssub.s32 128, 128
      %26 = vsyncadd [#allocation6], %s25
      %s28 = sshll.u32 [#allocation5], 4
      %s29 = int_to_ptr.vmem [resolvable:$true] %s28
      %31 = dma.hbm_to_vmem [thread:$0]  %s1, 128, %s29, [#allocation6]
    $region9: #{tpu_custom_call.1} parent=1 // pred_fallthru
      _
    // Predicated region
    $region10: #{tpu_custom_call.1} parent=1 // pred_check
      _
    $region11: #{tpu_custom_call.1} parent=1 // pred_check_branch
      %33 = sbr.rel (0) target = $region13
    $region12: #{tpu_custom_call.1} parent=1 // pred_region
      %s35 = ssub.s32 128, 128
      %36 = vsyncadd [#allocation6], %s35
      %s38 = sshll.u32 [#allocation7], 4
      %s39 = int_to_ptr.vmem [resolvable:$true] %s38
      %41 = dma.hbm_to_vmem [thread:$0]  %s2, 128, %s39, [#allocation6]
    $region13: #{tpu_custom_call.1} parent=1 // pred_fallthru
      _
    // Predicated region
    $region14: #{tpu_custom_call.1} parent=1 // pred_check
      _
    $region15: #{tpu_custom_call.1} parent=1 // pred_check_branch
      %43 = sbr.rel (0) target = $region17
    $region16: #{tpu_custom_call.1} parent=1 // pred_region
      _
    $region17: #{tpu_custom_call.1} parent=1 // pred_fallthru
      _
    // Predicated region
    $region18: #{tpu_custom_call.1} parent=1 // pred_check
      _
    $region19: #{tpu_custom_call.1} parent=1 // pred_check_branch
      %45 = sbr.rel (0) target = $region21
    $region20: #{tpu_custom_call.1} parent=1 // pred_region
      %46 = dma.done [#allocation3], 128
    $region21: #{tpu_custom_call.1} parent=1 // pred_fallthru
      _
    // Predicated region
    $region22: #{tpu_custom_call.1} parent=1 // pred_check
      _
    $region23: #{tpu_custom_call.1} parent=1 // pred_check_branch
      %48 = sbr.rel (0) target = $region25
    $region24: #{tpu_custom_call.1} parent=1 // pred_region
      %49 = dma.done [#allocation6], 128
    $region25: #{tpu_custom_call.1} parent=1 // pred_fallthru
      _
    // Predicated region
    $region26: #{tpu_custom_call.1} parent=1 // pred_check
      _
    $region27: #{tpu_custom_call.1} parent=1 // pred_check_branch
      %51 = sbr.rel (0) target = $region29
    $region28: #{tpu_custom_call.1} parent=1 // pred_region
      %52 = dma.done [#allocation6], 128
    $region29: #{tpu_custom_call.1} parent=1 // pred_fallthru
      _
    %v53 = vld [vmem:[#allocation2] sm:$0xff]
    %v54 = vsub.f32 %v53, 0.5
    %v55 = vmul.f32 %v54, 4.0
    %v56 = vtanh.pop %v55
    %v57 = vmul.f32 %v56, -1.0
    %v58 = vadd.f32 %v57, 1.0
    %v59 = vld [vmem:[#allocation5] sm:$0xff]
    %v60 = vld [vmem:[#allocation7] sm:$0xff]
    %vm61 = vcmask 64512
    %v63 = vsel %vm61, %v58, 0
    %65 = vmatprep.subr.mxu0 0.0
    %66 = vmatpush1.msra.mxu0 0.0
    %67 = vmatprep.subr.mxu0 0.0
    %68 = vmatpush1.msra.mxu0 0.0
    %69 = vmatprep.subr.mxu0 0.0
    %70 = vmatpush1.msra.mxu0 0.0
    %71 = vmatprep.subr.mxu0 0.0
    %72 = vmatpush1.msra.mxu0 0.0
    %73 = vmatprep.subr.mxu0 0.0
    %74 = vmatpush1.msra.mxu0 0.0
    %75 = vmatprep.subr.mxu0 0.0
    %76 = vmatpush1.msra.mxu0 0.0
    %77 = vmatprep.subr.mxu0 0.0
    %78 = vmatpush1.msra.mxu0 0.0
    %79 = vmatprep.subr.mxu0 0.0
    %80 = vmatpush1.msra.mxu0 0.0
    %81 = vmatprep.subr.mxu0 0.0
    %82 = vmatpush1.msra.mxu0 0.0
    %83 = vmatprep.subr.mxu0 0.0
    %84 = vmatpush1.msra.mxu0 0.0
    %85 = vmatprep.subr.mxu0 0.0
    %86 = vmatpush1.msra.mxu0 0.0
    %87 = vmatprep.subr.mxu0 0.0
    %88 = vmatpush1.msra.mxu0 0.0
    %89 = vmatprep.subr.mxu0 0.0
    %90 = vmatpush1.msra.mxu0 0.0
    %91 = vmatprep.subr.mxu0 0.0
    %92 = vmatpush1.msra.mxu0 0.0
    %93 = vmatprep.subr.mxu0 0.0
    %94 = vmatpush1.msra.mxu0 0.0
    %95 = vmatprep.subr.mxu0 0.0
    %96 = vmatpush1.msra.mxu0 %v60
    %97 = vmatprep.subr.mxu0 0.0
    %98 = vmatpush2.msra.mxu0 0.0
    %99 = vmatprep.subr.mxu0 0.0
    %100 = vmatpush2.msra.mxu0 0.0
    %101 = vmatprep.subr.mxu0 0.0
    %102 = vmatpush2.msra.mxu0 0.0
    %103 = vmatprep.subr.mxu0 0.0
    %104 = vmatpush2.msra.mxu0 0.0
    %105 = vmatprep.subr.mxu0 0.0
    %106 = vmatpush2.msra.mxu0 0.0
    %107 = vmatprep.subr.mxu0 0.0
    %108 = vmatpush2.msra.mxu0 0.0
    %109 = vmatprep.subr.mxu0 0.0
    %110 = vmatpush2.msra.mxu0 0.0
    %111 = vmatprep.subr.mxu0 0.0
    %112 = vmatpush2.msra.mxu0 0.0
    %113 = vmatprep.subr.mxu0 0.0
    %114 = vmatpush2.msra.mxu0 0.0
    %115 = vmatprep.subr.mxu0 0.0
    %116 = vmatpush2.msra.mxu0 0.0
    %117 = vmatprep.subr.mxu0 0.0
    %118 = vmatpush2.msra.mxu0 0.0
    %119 = vmatprep.subr.mxu0 0.0
    %120 = vmatpush2.msra.mxu0 0.0
    %121 = vmatprep.subr.mxu0 0.0
    %122 = vmatpush2.msra.mxu0 0.0
    %123 = vmatprep.subr.mxu0 0.0
    %124 = vmatpush2.msra.mxu0 0.0
    %125 = vmatprep.subr.mxu0 0.0
    %126 = vmatpush2.msra.mxu0 0.0
    %127 = vmatprep.subr.mxu0 0.0
    %128 = vmatpush2.msra.mxu0 0.0
    %129 = vmatprep.mubr.f32.mxu0 0.0
    %130 = vmatmul.mubr.f32.gmra.mxu0 %v63
    %v131 = vpop.f32.mrf.mxu0
    %v132 = vadd.f32 0.0, %v131
    %v133 = vpop.f32.mrf.mxu0
    %134 = vdwg.mxu0
    %v136 = vsel %vm61, %v53, 0
    %138 = vmatprep.subr.mxu0 0.0
    %139 = vmatpush1.msra.mxu0 0.0
    %140 = vmatprep.subr.mxu0 0.0
    %141 = vmatpush1.msra.mxu0 0.0
    %142 = vmatprep.subr.mxu0 0.0
    %143 = vmatpush1.msra.mxu0 0.0
    %144 = vmatprep.subr.mxu0 0.0
    %145 = vmatpush1.msra.mxu0 0.0
    %146 = vmatprep.subr.mxu0 0.0
    %147 = vmatpush1.msra.mxu0 0.0
    %148 = vmatprep.subr.mxu0 0.0
    %149 = vmatpush1.msra.mxu0 0.0
    %150 = vmatprep.subr.mxu0 0.0
    %151 = vmatpush1.msra.mxu0 0.0
    %152 = vmatprep.subr.mxu0 0.0
    %153 = vmatpush1.msra.mxu0 0.0
    %154 = vmatprep.subr.mxu0 0.0
    %155 = vmatpush1.msra.mxu0 0.0
    %156 = vmatprep.subr.mxu0 0.0
    %157 = vmatpush1.msra.mxu0 0.0
    %158 = vmatprep.subr.mxu0 0.0
    %159 = vmatpush1.msra.mxu0 0.0
    %160 = vmatprep.subr.mxu0 0.0
    %161 = vmatpush1.msra.mxu0 0.0
    %162 = vmatprep.subr.mxu0 0.0
    %163 = vmatpush1.msra.mxu0 0.0
    %164 = vmatprep.subr.mxu0 0.0
    %165 = vmatpush1.msra.mxu0 0.0
    %166 = vmatprep.subr.mxu0 0.0
    %167 = vmatpush1.msra.mxu0 0.0
    %168 = vmatprep.subr.mxu0 0.0
    %169 = vmatpush1.msra.mxu0 %v59
    %170 = vmatprep.subr.mxu0 0.0
    %171 = vmatpush2.msra.mxu0 0.0
    %172 = vmatprep.subr.mxu0 0.0
    %173 = vmatpush2.msra.mxu0 0.0
    %174 = vmatprep.subr.mxu0 0.0
    %175 = vmatpush2.msra.mxu0 0.0
    %176 = vmatprep.subr.mxu0 0.0
    %177 = vmatpush2.msra.mxu0 0.0
    %178 = vmatprep.subr.mxu0 0.0
    %179 = vmatpush2.msra.mxu0 0.0
    %180 = vmatprep.subr.mxu0 0.0
    %181 = vmatpush2.msra.mxu0 0.0
    %182 = vmatprep.subr.mxu0 0.0
    %183 = vmatpush2.msra.mxu0 0.0
    %184 = vmatprep.subr.mxu0 0.0
    %185 = vmatpush2.msra.mxu0 0.0
    %186 = vmatprep.subr.mxu0 0.0
    %187 = vmatpush2.msra.mxu0 0.0
    %188 = vmatprep.subr.mxu0 0.0
    %189 = vmatpush2.msra.mxu0 0.0
    %190 = vmatprep.subr.mxu0 0.0
    %191 = vmatpush2.msra.mxu0 0.0
    %192 = vmatprep.subr.mxu0 0.0
    %193 = vmatpush2.msra.mxu0 0.0
    %194 = vmatprep.subr.mxu0 0.0
    %195 = vmatpush2.msra.mxu0 0.0
    %196 = vmatprep.subr.mxu0 0.0
    %197 = vmatpush2.msra.mxu0 0.0
    %198 = vmatprep.subr.mxu0 0.0
    %199 = vmatpush2.msra.mxu0 0.0
    %200 = vmatprep.subr.mxu0 0.0
    %201 = vmatpush2.msra.mxu0 0.0
    %202 = vmatprep.mubr.f32.mxu0 0.0
    %203 = vmatmul.mubr.f32.gmra.mxu0 %v136
    %v204 = vpop.f32.mrf.mxu0
    %v205 = vadd.f32 %v132, %v204
    %v206 = vpop.f32.mrf.mxu0
    %207 = vdwg.mxu0
    %v208 = vld [vmem:[%s3] sm:$0x1]
    %v210 = vlaneseq
    %v211 = vshrl.u32 %v210, 7
    %v212 = vsub.s32 0, %v211
    %v213 = vrot.slane %v208, %v212
    %v215 = vadd.f32 %v205, %v213
    %v216 = vsub.f32 %v215, 0.25
    %v217 = vmul.f32 %v216, 5.0
    %v218 = vtanh.pop %v217
    %v219 = vadd.f32 %v218, 0.0
    %220 = vst [vmem:[#allocation8] sm:$0xff] %v219
    // Predicated region
    $region30: #{tpu_custom_call.1} parent=1 // pred_check
      _
    $region31: #{tpu_custom_call.1} parent=1 // pred_check_branch
      %222 = sbr.rel (0) target = $region33
    $region32: #{tpu_custom_call.1} parent=1 // pred_region
      %s224 = ssub.s32 128, 128
      %225 = vsyncadd [#allocation4], %s224
      %s227 = sshll.u32 [#allocation8], 4
      %s228 = int_to_ptr.vmem [resolvable:$true] %s227
      %230 = dma.vmem_to_hbm [thread:$0]  %s228, 128, %s4, [#allocation4]
    $region33: #{tpu_custom_call.1} parent=1 // pred_fallthru
      _
    // Predicated region
    $region34: #{tpu_custom_call.1} parent=1 // pred_check
      _
    $region35: #{tpu_custom_call.1} parent=1 // pred_check_branch
      %232 = sbr.rel (0) target = $region37
    $region36: #{tpu_custom_call.1} parent=1 // pred_region
      %233 = dma.done [#allocation4], 128
    $region37: #{tpu_custom_call.1} parent=1 // pred_fallthru
      _
    %234 = vsyncpa [#allocation3], 1
    %235 = vsyncpa [#allocation6], 1
    %236 = vsyncpa [#allocation4], 1

</llo_original>
